<compile_context>
chip_gen: v6e
topology: v6e:2x2x1
jax: 0.10.0
libtpu: 0.0.40
codegen_flags: <defaults>
</compile_context>

<pallas_src>
import jax
import jax.numpy as jnp
from jax.experimental import pallas as pl
from jax.experimental.pallas import tpu as pltpu


def _round_up(x, m):
    return ((x + m - 1) // m) * m


def _vmem_capacity_bytes():
    """Per-core VMEM capacity, with a conservative (v7x, 64 MiB) fallback."""
    try:
        cap = int(pltpu.get_tpu_info().vmem_capacity_bytes)
        if cap > 0:
            return cap
    except Exception:
        pass
    return 64 << 20


def _pick_tile(n_tok, max_tile):
    """Largest multiple-of-8 tile <= max_tile with <=25% token padding waste."""
    cap = max(8, min(max_tile, _round_up(n_tok, 8)))
    cap -= cap % 8
    for cand in range(cap, 7, -8):
        pad = _round_up(n_tok, cand) - n_tok
        if 4 * pad <= cand:
            return cand
    return 8


# ---------------------------------------------------------------------------
# Resident-table path: vocab-chunked one-hot matmul on the MXU.
# ---------------------------------------------------------------------------
def _make_onehot_kernel(chunk_v, n_chunks):
    def kernel(ids_ref, table_ref, out_ref, acc_ref):
        # ids_ref:   (1, tile, 1) int32   -- this tile's token ids
        # table_ref: (vocab_p, e_pad)     -- full table, VMEM-resident
        # out_ref:   (tile, e_pad)
        # acc_ref:   (tile, e_pad) f32 scratch (used when n_chunks > 1)
        ids_col = ids_ref[0]                                   # (tile, 1)
        tile_t = out_ref.shape[0]

        if n_chunks == 1:
            col = jax.lax.broadcasted_iota(jnp.int32, (tile_t, chunk_v), 1)
            one_hot = (col == ids_col).astype(table_ref.dtype)
            out_ref[...] = jnp.dot(
                one_hot, table_ref[...], preferred_element_type=jnp.float32
            ).astype(out_ref.dtype)
            return

        acc_ref[...] = jnp.zeros_like(acc_ref)

        def body(c, carry):
            start = pl.multiple_of(c * chunk_v, chunk_v)
            col = jax.lax.broadcasted_iota(jnp.int32, (tile_t, chunk_v), 1) + start
            one_hot = (col == ids_col).astype(table_ref.dtype)
            acc_ref[...] += jnp.dot(
                one_hot, table_ref[pl.ds(start, chunk_v), :],
                preferred_element_type=jnp.float32)
            return carry

        jax.lax.fori_loop(0, n_chunks, body, 0)
        out_ref[...] = acc_ref[...].astype(out_ref.dtype)

    return kernel


# ---------------------------------------------------------------------------
# Non-resident path: grouped manual HBM row gather (table stays in HBM).
# ---------------------------------------------------------------------------
def _make_gather_kernel(group):
    def kernel(ids_smem, table_hbm, out_ref, staging, sems):
        # ids_smem:  (sb_tokens,) int32 in SMEM (scalar prefetch)
        # table_hbm: (vocab, e_pad) raw HBM ref (memory_space=pl.ANY)
        # out_ref:   (group, e_pad) output tile
        # staging:   (group, e_pad) VMEM staging buffer
        # sems:      (group,) DMA semaphores
        base = pl.program_id(0) * group
        # Launch `group` single-row DMAs, all in flight.
        for t in range(group):
            row = ids_smem[base + t]
            pltpu.make_async_copy(
                table_hbm.at[pl.ds(row, 1), :],
                staging.at[pl.ds(t, 1), :],
                sems.at[t],
            ).start()
        # Wait for all of them, then one aligned (group, e_pad) store.
        for t in range(group):
            row = ids_smem[base + t]
            pltpu.make_async_copy(
                table_hbm.at[pl.ds(row, 1), :],
                staging.at[pl.ds(t, 1), :],
                sems.at[t],
            ).wait()
        out_ref[...] = staging[...]

    return kernel


def _gather_embed(flat_ids, table_e_padded, group, max_prefetch_ids):
    """Grouped manual HBM row gather; returns (round_up(n_tok, group), e_pad)."""
    n_tok = flat_ids.shape[0]
    e_pad = table_e_padded.shape[1]
    n_pad = _round_up(n_tok, group)
    if n_pad != n_tok:
        flat_ids = jnp.concatenate(
            [flat_ids, jnp.zeros((n_pad - n_tok,), jnp.int32)])

    # Bound the SMEM scalar prefetch: chunk tokens into super-blocks.
    sb = max(group, (max_prefetch_ids // group) * group)
    kernel = _make_gather_kernel(group)
    pieces = []
    for start in range(0, n_pad, sb):
        ids_sb = flat_ids[start:start + sb]
        n_sb = ids_sb.shape[0]
        out_sb = pl.pallas_call(
            kernel,
            out_shape=jax.ShapeDtypeStruct((n_sb, e_pad), table_e_padded.dtype),
            grid_spec=pltpu.PrefetchScalarGridSpec(
                num_scalar_prefetch=1,
                grid=(n_sb // group,),
                in_specs=[pl.BlockSpec(memory_space=pl.ANY)],  # table stays in HBM
                out_specs=pl.BlockSpec((group, e_pad), lambda i, ids: (i, 0)),
                scratch_shapes=[
                    pltpu.VMEM((group, e_pad), table_e_padded.dtype),
                    pltpu.SemaphoreType.DMA((group,)),
                ],
            ),
            compiler_params=pltpu.CompilerParams(
                dimension_semantics=("parallel",)),
        )(ids_sb, table_e_padded)
        pieces.append(out_sb)
    return pieces[0] if len(pieces) == 1 else jnp.concatenate(pieces, axis=0)


def word_embedding_forward(query_text, word_embed, *,
                           tile_tokens=256,
                           vocab_chunk=512,
                           group_tokens=16,
                           reuse_factor=4.0,
                           max_prefetch_ids=32768):
    """Pallas equivalent of WordEmbedding.forward (nn.Embedding row gather).

    query_text: (batch, seq) integer token ids
    word_embed: (vocab, embed_units) float table
    returns:    (batch, seq, embed_units)
    """
    batch, seq = query_text.shape
    vocab, embed_units = word_embed.shape
    n_tok = batch * seq
    itemsize = jnp.dtype(word_embed.dtype).itemsize

    # Lane-dense output: pad E up to a multiple of 128 (sliced off at the end).
    e_pad = max(128, _round_up(embed_units, 128))

    # Clamp ids so malformed inputs can never index out of bounds.
    flat_ids = jnp.clip(query_text.reshape(n_tok).astype(jnp.int32), 0, vocab - 1)

    # ----- resident-path sizing ---------------------------------------------
    chunk_v = max(8, vocab_chunk - vocab_chunk % 8)
    chunk_v = min(chunk_v, _round_up(vocab, 8))
    vocab_p = _round_up(vocab, chunk_v)
    n_chunks = vocab_p // chunk_v
    table_bytes = vocab_p * e_pad * itemsize

    tile = _pick_tile(n_tok, tile_tokens)
    n_tok_pad = _round_up(n_tok, tile)
    n_tiles = n_tok_pad // tile

    cap = _vmem_capacity_bytes()
    # Per-grid-step working set: double-buffered output tile, f32 accumulator,
    # one-hot + iota chunk intermediates, ids tile, plus slack.
    work = (2 * tile * e_pad * itemsize
            + tile * e_pad * 4
            + 2 * tile * chunk_v * 4
            + 4 * tile * 4
            + (2 << 20))
    # The constant-index table block may still be double-buffered by the
    # pipeline (if Buffered(1) is unsupported) -> budget for 2 copies.
    table_budget = max(0, (cap - (8 << 20) - work) // 2)

    # Reuse-aware path choice: only stream the whole table into VMEM when it is
    # not much bigger than the rows we actually need.
    needed_bytes = n_tok * e_pad * itemsize
    use_resident = (table_bytes <= table_budget
                    and table_bytes <= reuse_factor * needed_bytes)

    if use_resident:
        # --- MXU one-hot gather over the VMEM-resident table ---
        tbl = word_embed
        if vocab_p != vocab or e_pad != embed_units:
            tbl = jnp.pad(word_embed,
                          ((0, vocab_p - vocab), (0, e_pad - embed_units)))
        ids = flat_ids
        if n_tok_pad != n_tok:
            ids = jnp.concatenate(
                [ids, jnp.zeros((n_tok_pad - n_tok,), jnp.int32)])
        ids_3d = ids.reshape(n_tiles, tile, 1)

        est = 2 * table_bytes + work
        vmem_limit = int(min(est, cap - (2 << 20))) if est > (16 << 20) else None
        cparams = pltpu.CompilerParams(
            dimension_semantics=("parallel",),
            vmem_limit_bytes=vmem_limit,
        )
        kernel = _make_onehot_kernel(chunk_v, n_chunks)

        def run(single_buffer_table):
            if single_buffer_table:
                table_spec = pl.BlockSpec((vocab_p, e_pad), lambda i: (0, 0),
                                          pipeline_mode=pl.Buffered(1))
            else:
                table_spec = pl.BlockSpec((vocab_p, e_pad), lambda i: (0, 0))
            out = pl.pallas_call(
                kernel,
                out_shape=jax.ShapeDtypeStruct((n_tok_pad, e_pad),
                                               word_embed.dtype),
                grid_spec=pltpu.PrefetchScalarGridSpec(
                    num_scalar_prefetch=0,
                    grid=(n_tiles,),
                    in_specs=[
                        pl.BlockSpec((1, tile, 1), lambda i: (i, 0, 0)),
                        table_spec,
                    ],
                    out_specs=pl.BlockSpec((tile, e_pad), lambda i: (i, 0)),
                    scratch_shapes=[pltpu.VMEM((tile, e_pad), jnp.float32)],
                ),
                compiler_params=cparams,
            )(ids_3d, tbl)
            return jax.block_until_ready(out)

        try:
            # Single-buffered resident table (halves its VMEM footprint).
            out_flat = run(True)
        except Exception:
            # If this Pallas build rejects Buffered(1), fall back to the default
            # (double-buffered) table spec; the VMEM budget already assumes 2x.
            out_flat = run(False)
    else:
        # --- grouped manual HBM row gather (table stays in HBM) ---
        tbl = word_embed
        if e_pad != embed_units:
            tbl = jnp.pad(word_embed, ((0, 0), (0, e_pad - embed_units)))
        group = max(8, min(group_tokens, _round_up(n_tok, 8)))
        group -= group % 8
        out_flat = _gather_embed(flat_ids, tbl, group, max_prefetch_ids)

    return out_flat[:n_tok, :embed_units].reshape(batch, seq, embed_units)


if __name__ == "__main__":
    key = jax.random.PRNGKey(0)
    k1, k2, k3, k4, k5, k6 = jax.random.split(key, 6)

    # --- Test 1: small vocab -> VMEM-resident single-chunk one-hot MXU path ---
    vocab, E, batch, seq = 64, 128, 2, 8
    tbl1 = jax.random.normal(k1, (vocab, E), dtype=jnp.float32)
    ids1 = jax.random.randint(k2, (batch, seq), 0, vocab, dtype=jnp.int32)
    out1 = jax.block_until_ready(word_embedding_forward(ids1, tbl1))
    ref1 = jnp.take(tbl1, ids1, axis=0)
    assert out1.shape == (batch, seq, E)
    assert jnp.allclose(out1, ref1), "resident one-hot path mismatch"

    # --- Test 2: vocab-chunked one-hot path (chunks of 128, E padded 96->128) --
    vocab, E, batch, seq = 512, 96, 3, 7
    tbl2 = jax.random.normal(k3, (vocab, E), dtype=jnp.float32)
    ids2 = jax.random.randint(k4, (batch, seq), 0, vocab, dtype=jnp.int32)
    out2 = jax.block_until_ready(
        word_embedding_forward(ids2, tbl2, vocab_chunk=128, reuse_factor=1e9))
    ref2 = jnp.take(tbl2, ids2, axis=0)
    assert out2.shape == (batch, seq, E)
    assert jnp.allclose(out2, ref2), "chunked one-hot path mismatch"

    # --- Test 3: non-resident HBM row-gather path (grouped manual DMAs) -------
    vocab, E, batch, seq = 300, 96, 2, 9
    tbl3 = jax.random.normal(k5, (vocab, E), dtype=jnp.float32)
    ids3 = jax.random.randint(k6, (batch, seq), 0, vocab, dtype=jnp.int32)
    out3 = jax.block_until_ready(
        word_embedding_forward(ids3, tbl3, reuse_factor=0.0))
    ref3 = jnp.take(tbl3, ids3, axis=0)
    assert out3.shape == (batch, seq, E)
    assert jnp.allclose(out3, ref3), "HBM gather path mismatch"

    print("KERNEL_OK")
</pallas_src>

<mosaic_0001>
module attributes {stable_mosaic.version = 11 : i64} {
  func.func @kernel(%arg0: i32, %arg1: memref<1x16x1xi32, #tpu.memory_space<vmem>>, %arg2: memref<64x128xf32, #tpu.memory_space<vmem>>, %arg3: memref<16x128xf32, #tpu.memory_space<vmem>>, %arg4: memref<16x128xf32, #tpu.memory_space<vmem>>) attributes {dimension_semantics = [#tpu.dimension_semantics<parallel>], iteration_bounds = array<i64: 1>, scalar_prefetch = 0 : i64, scratch_operands = 1 : i64, tpu.core_type = #tpu.core_type<tc>, window_params = [{transform_indices = @transform_0, window_bounds = array<i64: 1, 16, 1>}, {pipeline_mode = #tpu.pipeline_mode<synchronous>, transform_indices = @transform_1, window_bounds = array<i64: 64, 128>}, {transform_indices = @transform_2, window_bounds = array<i64: 16, 128>}]} {
    %c0 = arith.constant 0 : index
    %c0_0 = arith.constant 0 : index
    %c0_1 = arith.constant 0 : index
    %0 = vector.load %arg1[%c0, %c0_0, %c0_1] : memref<1x16x1xi32, #tpu.memory_space<vmem>>, vector<1x16x1xi32>
    %1 = vector.shape_cast %0 : vector<1x16x1xi32> to vector<16x1xi32>
    %2 = tpu.iota {dimensions = array<i32: 1>} : vector<16x64xi32>
    %3 = vector.broadcast %1 : vector<16x1xi32> to vector<16x64xi32>
    %4 = arith.cmpi eq, %2, %3 : vector<16x64xi32>
    %5 = arith.extui %4 : vector<16x64xi1> to vector<16x64xi32>
    %6 = arith.sitofp %5 : vector<16x64xi32> to vector<16x64xf32>
    %c0_2 = arith.constant 0 : index
    %c0_3 = arith.constant 0 : index
    %7 = vector.load %arg2[%c0_2, %c0_3] : memref<64x128xf32, #tpu.memory_space<vmem>>, vector<64x128xf32>
    %cst = arith.constant dense<0.000000e+00> : vector<16x128xf32>
    %8 = tpu.matmul %6, %7, %cst {dimension_numbers = #tpu.dot_dimension_numbers<[1], [0], [0], [1], [0, 0, 1, 1], [], []>} : vector<16x64xf32>, vector<64x128xf32>, vector<16x128xf32> -> vector<16x128xf32>
    %c0_4 = arith.constant 0 : index
    %c0_5 = arith.constant 0 : index
    %9 = vector.load %arg3[%c0_4, %c0_5] : memref<16x128xf32, #tpu.memory_space<vmem>>, vector<16x128xf32>
    tpu.vector_store %arg3[%c0_4, %c0_5], %8 {strides = array<i32>} : memref<16x128xf32, #tpu.memory_space<vmem>>, vector<16x128xf32>,
    return
  }
  func.func @transform_0(%arg0: i32) -> (i32, i32, i32) {
    %c0_i32 = arith.constant 0 : i32
    %c0_i32_0 = arith.constant 0 : i32
    %c0_i32_1 = arith.constant 0 : i32
    return %arg0, %c0_i32, %c0_i32_0 : i32, i32, i32
  }
  func.func @transform_1(%arg0: i32) -> (i32, i32) {
    %c0_i32 = arith.constant 0 : i32
    %c0_i32_0 = arith.constant 0 : i32
    %c0_i32_1 = arith.constant 0 : i32
    return %c0_i32, %c0_i32_0 : i32, i32
  }
  func.func @transform_2(%arg0: i32) -> (i32, i32) {
    %c0_i32 = arith.constant 0 : i32
    %c0_i32_0 = arith.constant 0 : i32
    return %arg0, %c0_i32 : i32, i32
  }
}

module attributes {stable_mosaic.version = 11 : i64} {
  func.func @kernel(%arg0: i32, %arg1: memref<1x16x1xi32, #tpu.memory_space<vmem>>, %arg2: memref<64x128xf32, #tpu.memory_space<vmem>>, %arg3: memref<16x128xf32, #tpu.memory_space<vmem>>, %arg4: memref<16x128xf32, #tpu.memory_space<vmem>>) attributes {dimension_semantics = [#tpu.dimension_semantics<parallel>], iteration_bounds = array<i64: 1>, scalar_prefetch = 0 : i64, scratch_operands = 1 : i64, tpu.core_type = #tpu.core_type<tc>, window_params = [{transform_indices = @transform_0, window_bounds = array<i64: 1, 16, 1>}, {pipeline_mode = #tpu.pipeline_mode<synchronous>, transform_indices = @transform_1, window_bounds = array<i64: 64, 128>}, {transform_indices = @transform_2, window_bounds = array<i64: 16, 128>}]} {
    %c0 = arith.constant 0 : index
    %c0_0 = arith.constant 0 : index
    %c0_1 = arith.constant 0 : index
    %0 = vector.load %arg1[%c0, %c0_0, %c0_1] : memref<1x16x1xi32, #tpu.memory_space<vmem>>, vector<1x16x1xi32>
    %1 = vector.shape_cast %0 : vector<1x16x1xi32> to vector<16x1xi32>
    %2 = tpu.iota {dimensions = array<i32: 1>} : vector<16x64xi32>
    %3 = vector.broadcast %1 : vector<16x1xi32> to vector<16x64xi32>
    %4 = arith.cmpi eq, %2, %3 : vector<16x64xi32>
    %5 = arith.extui %4 : vector<16x64xi1> to vector<16x64xi32>
    %6 = arith.sitofp %5 : vector<16x64xi32> to vector<16x64xf32>
    %c0_2 = arith.constant 0 : index
    %c0_3 = arith.constant 0 : index
    %7 = vector.load %arg2[%c0_2, %c0_3] : memref<64x128xf32, #tpu.memory_space<vmem>>, vector<64x128xf32>
    %cst = arith.constant dense<0.000000e+00> : vector<16x128xf32>
    %8 = tpu.matmul %6, %7, %cst {dimension_numbers = #tpu.dot_dimension_numbers<[1], [0], [0], [1], [0, 0, 1, 1], [], []>} : vector<16x64xf32>, vector<64x128xf32>, vector<16x128xf32> -> vector<16x128xf32>
    %c0_4 = arith.constant 0 : index
    %c0_5 = arith.constant 0 : index
    %9 = vector.load %arg3[%c0_4, %c0_5] : memref<16x128xf32, #tpu.memory_space<vmem>>, vector<16x128xf32>
    tpu.vector_store %arg3[%c0_4, %c0_5], %8 {strides = array<i32>} : memref<16x128xf32, #tpu.memory_space<vmem>>, vector<16x128xf32>,
    return
  }
  func.func @transform_0(%arg0: i32) -> (i32, i32, i32) {
    %c0_i32 = arith.constant 0 : i32
    %c0_i32_0 = arith.constant 0 : i32
    %c0_i32_1 = arith.constant 0 : i32
    return %arg0, %c0_i32, %c0_i32_0 : i32, i32, i32
  }
  func.func @transform_1(%arg0: i32) -> (i32, i32) {
    %c0_i32 = arith.constant 0 : i32
    %c0_i32_0 = arith.constant 0 : i32
    %c0_i32_1 = arith.constant 0 : i32
    return %c0_i32, %c0_i32_0 : i32, i32
  }
  func.func @transform_2(%arg0: i32) -> (i32, i32) {
    %c0_i32 = arith.constant 0 : i32
    %c0_i32_0 = arith.constant 0 : i32
    return %arg0, %c0_i32 : i32, i32
  }
}

</mosaic_0001>

<llo_original>
// kernel: tpu_custom_call.1
$region0: #{tpu_custom_call.1}
  #allocation0 [shape = 'u32[]', space=smem, size = 0x4, offset = 0x4, fixed_abs, tag = 'smem constant byte address 0x4 - core index']
  #allocation1 [shape = 'u32[144,128]{1,0:T(1,128)}', space=vmem, size = 0x12000, scoped, tag = 'internal scratch']
  #allocation2 [shape = 'f32[16,128]{1,0:T(8,128)}', space=vmem, size = 0x2000, scoped, tag = 'scratch operand']
  %s0 = inlined_call_operand.vmem [shape: s32[1,16,1], index: 0, kind: input, shape index: {}]
  %s1 = inlined_call_operand.hbm [shape: f32[64,128], index: 1, kind: input, shape index: {}]
  %s2 = inlined_call_operand.hbm [shape: f32[16,128], index: 2, kind: output, shape index: {}]
  %s3 = sld [smem:[#allocation0]]
  $region22: #{tpu_custom_call.1} parent=0
    _
  %s5 = ssub.s32 1, %s3
  %s6 = scalar_select 0, %s5, %s3
  $region1: #{tpu_custom_call.1} parent=0
    #allocation3 [shape = 'u8[32768]{0}', space=vmem, size = 0x8000, scoped, tag = 'input window, operand 1, single buffered']
    #allocation4 [shape = 's32[1]{0}', space=sflag, size = 0x4, scoped, tag = 'scoped memory for tpu_custom_call.1']
    #allocation5 [shape = 's32[1]{0}', space=sflag, size = 0x4, scoped, tag = 'scoped memory for tpu_custom_call.1']
    #allocation6 [shape = 'u8[8192]{0}', space=vmem, size = 0x2000, scoped, tag = 'output window, operand 0, single buffered']
    %7 = vsyncpa [#allocation4], 0
    %8 = vsyncpa [#allocation5], 0
    // Predicated region
    $region2: #{tpu_custom_call.1} parent=1 // pred_check
      _
    $region3: #{tpu_custom_call.1} parent=1 // pred_check_branch
      %10 = sbr.rel (0) target = $region5
    $region4: #{tpu_custom_call.1} parent=1 // pred_region
      _
    $region5: #{tpu_custom_call.1} parent=1 // pred_fallthru
      _
    // Predicated region
    $region6: #{tpu_custom_call.1} parent=1 // pred_check
      _
    $region7: #{tpu_custom_call.1} parent=1 // pred_check_branch
      %12 = sbr.rel (0) target = $region9
    $region8: #{tpu_custom_call.1} parent=1 // pred_region
      %s14 = ssub.s32 1024, 1024
      %15 = vsyncadd [#allocation4], %s14
      %s16 = sshll.u32 [#allocation3], 4
      %s17 = int_to_ptr.vmem [resolvable:$true] %s16
      %22 = dma.hbm_to_vmem [thread:$0]  %s1, 1024, %s17, [#allocation4], 128, 128, 8
    $region9: #{tpu_custom_call.1} parent=1 // pred_fallthru
      _
    // Predicated region
    $region10: #{tpu_custom_call.1} parent=1 // pred_check
      _
    $region11: #{tpu_custom_call.1} parent=1 // pred_check_branch
      %24 = sbr.rel (0) target = $region13
    $region12: #{tpu_custom_call.1} parent=1 // pred_region
      %25 = dma.done [#allocation4], 1024
    $region13: #{tpu_custom_call.1} parent=1 // pred_fallthru
      _
    %v26 = vld [vmem:[%s0] sm:$0xff]
    %v27 = vld [vmem:[%s0 + $0x8] sm:$0xff]
    %v28 = vlaneseq
    %v29 = vand.u32 %v28, 127
    %30 = vset.pattern.permute.xlu0 0
    %31 = vperm.xlu0 %30, %v26
    %v32 = vpop.permute.xlu0 %31
    %33 = vset.pattern.permute.xlu0 0
    %34 = vperm.xlu0 %33, %v27
    %v35 = vpop.permute.xlu0 %34
    %vm36 = vcmp.eq.s32.totalorder %v29, %v32
    %vm37 = vcmp.eq.s32.totalorder %v29, %v35
    %v38 = vsel %vm36, 1, 0
    %v39 = vsel %vm37, 1, 0
    %v40 = vcvt.s32.f32 %v38
    %v41 = vcvt.s32.f32 %v39
    %v42 = vld [vmem:[#allocation3] sm:$0xff]
    %v43 = vld [vmem:[#allocation3 + $0x8] sm:$0xff]
    %v44 = vld [vmem:[#allocation3 + $0x10] sm:$0xff]
    %v45 = vld [vmem:[#allocation3 + $0x18] sm:$0xff]
    %v46 = vld [vmem:[#allocation3 + $0x20] sm:$0xff]
    %v47 = vld [vmem:[#allocation3 + $0x28] sm:$0xff]
    %v48 = vld [vmem:[#allocation3 + $0x30] sm:$0xff]
    %v49 = vld [vmem:[#allocation3 + $0x38] sm:$0xff]
    %vm50 = vcmask 523264
    %v52 = vsel %vm50, %v40, 0
    %v55 = vsel %vm50, %v41, 0
    %57 = vmatprep.subr.mxu0 0.0
    %58 = vmatpush1.msra.mxu0 0.0
    %59 = vmatprep.subr.mxu0 0.0
    %60 = vmatpush1.msra.mxu0 0.0
    %61 = vmatprep.subr.mxu0 0.0
    %62 = vmatpush1.msra.mxu0 0.0
    %63 = vmatprep.subr.mxu0 0.0
    %64 = vmatpush1.msra.mxu0 0.0
    %65 = vmatprep.subr.mxu0 0.0
    %66 = vmatpush1.msra.mxu0 0.0
    %67 = vmatprep.subr.mxu0 0.0
    %68 = vmatpush1.msra.mxu0 0.0
    %69 = vmatprep.subr.mxu0 0.0
    %70 = vmatpush1.msra.mxu0 0.0
    %71 = vmatprep.subr.mxu0 0.0
    %72 = vmatpush1.msra.mxu0 0.0
    %73 = vmatprep.subr.mxu0 0.0
    %74 = vmatpush1.msra.mxu0 %v49
    %75 = vmatprep.subr.mxu0 0.0
    %76 = vmatpush1.msra.mxu0 %v48
    %77 = vmatprep.subr.mxu0 0.0
    %78 = vmatpush1.msra.mxu0 %v47
    %79 = vmatprep.subr.mxu0 0.0
    %80 = vmatpush1.msra.mxu0 %v46
    %81 = vmatprep.subr.mxu0 0.0
    %82 = vmatpush1.msra.mxu0 %v45
    %83 = vmatprep.subr.mxu0 0.0
    %84 = vmatpush1.msra.mxu0 %v44
    %85 = vmatprep.subr.mxu0 0.0
    %86 = vmatpush1.msra.mxu0 %v43
    %87 = vmatprep.subr.mxu0 0.0
    %88 = vmatpush1.msra.mxu0 %v42
    %89 = vmatprep.subr.mxu0 0.0
    %90 = vmatpush2.msra.mxu0 0.0
    %91 = vmatprep.subr.mxu0 0.0
    %92 = vmatpush2.msra.mxu0 0.0
    %93 = vmatprep.subr.mxu0 0.0
    %94 = vmatpush2.msra.mxu0 0.0
    %95 = vmatprep.subr.mxu0 0.0
    %96 = vmatpush2.msra.mxu0 0.0
    %97 = vmatprep.subr.mxu0 0.0
    %98 = vmatpush2.msra.mxu0 0.0
    %99 = vmatprep.subr.mxu0 0.0
    %100 = vmatpush2.msra.mxu0 0.0
    %101 = vmatprep.subr.mxu0 0.0
    %102 = vmatpush2.msra.mxu0 0.0
    %103 = vmatprep.subr.mxu0 0.0
    %104 = vmatpush2.msra.mxu0 0.0
    %105 = vmatprep.subr.mxu0 0.0
    %106 = vmatpush2.msra.mxu0 0.0
    %107 = vmatprep.subr.mxu0 0.0
    %108 = vmatpush2.msra.mxu0 0.0
    %109 = vmatprep.subr.mxu0 0.0
    %110 = vmatpush2.msra.mxu0 0.0
    %111 = vmatprep.subr.mxu0 0.0
    %112 = vmatpush2.msra.mxu0 0.0
    %113 = vmatprep.subr.mxu0 0.0
    %114 = vmatpush2.msra.mxu0 0.0
    %115 = vmatprep.subr.mxu0 0.0
    %116 = vmatpush2.msra.mxu0 0.0
    %117 = vmatprep.subr.mxu0 0.0
    %118 = vmatpush2.msra.mxu0 0.0
    %119 = vmatprep.subr.mxu0 0.0
    %120 = vmatpush2.msra.mxu0 0.0
    %121 = vmatprep.mubr.f32.mxu0 0.0
    %122 = vmatmul.mubr.f32.gmra.mxu0 %v52
    %v123 = vpop.f32.mrf.mxu0
    %v124 = vadd.f32 0.0, %v123
    %v125 = vpop.f32.mrf.mxu0
    %126 = vmatprep.mubr.f32.mxu0 0.0
    %127 = vmatmul.mubr.f32.gmra.mxu0 %v55
    %v128 = vpop.f32.mrf.mxu0
    %v129 = vadd.f32 0.0, %v128
    %v130 = vpop.f32.mrf.mxu0
    %131 = vdwg.mxu0
    %132 = vst [vmem:[#allocation6] sm:$0xff] %v124
    %133 = vst [vmem:[#allocation6 + $0x8] sm:$0xff] %v129
    // Predicated region
    $region14: #{tpu_custom_call.1} parent=1 // pred_check
      _
    $region15: #{tpu_custom_call.1} parent=1 // pred_check_branch
      %135 = sbr.rel (0) target = $region17
    $region16: #{tpu_custom_call.1} parent=1 // pred_region
      %s137 = ssub.s32 256, 256
      %138 = vsyncadd [#allocation5], %s137
      %s139 = sshll.u32 [#allocation6], 4
      %s140 = int_to_ptr.vmem [resolvable:$true] %s139
      %145 = dma.vmem_to_hbm [thread:$0]  %s140, 256, %s2, [#allocation5], 128, 128, 8
    $region17: #{tpu_custom_call.1} parent=1 // pred_fallthru
      _
    // Predicated region
    $region18: #{tpu_custom_call.1} parent=1 // pred_check
      _
    $region19: #{tpu_custom_call.1} parent=1 // pred_check_branch
      %147 = sbr.rel (0) target = $region21
    $region20: #{tpu_custom_call.1} parent=1 // pred_region
      %148 = dma.done [#allocation5], 256
    $region21: #{tpu_custom_call.1} parent=1 // pred_fallthru
      _
    %149 = vsyncpa [#allocation4], 1
    %150 = vsyncpa [#allocation5], 1

// kernel: tpu_custom_call.1
$region0: #{tpu_custom_call.1}
  #allocation0 [shape = 'u32[]', space=smem, size = 0x4, offset = 0x4, fixed_abs, tag = 'smem constant byte address 0x4 - core index']
  #allocation1 [shape = 'u32[144,128]{1,0:T(1,128)}', space=vmem, size = 0x12000, scoped, tag = 'internal scratch']
  #allocation2 [shape = 'f32[16,128]{1,0:T(8,128)}', space=vmem, size = 0x2000, scoped, tag = 'scratch operand']
  %s0 = inlined_call_operand.vmem [shape: s32[1,16,1], index: 0, kind: input, shape index: {}]
  %s1 = inlined_call_operand.hbm [shape: f32[64,128], index: 1, kind: input, shape index: {}]
  %s2 = inlined_call_operand.hbm [shape: f32[16,128], index: 2, kind: output, shape index: {}]
  %s3 = sld [smem:[#allocation0]]
  $region22: #{tpu_custom_call.1} parent=0
    _
  %s5 = ssub.s32 1, %s3
  %s6 = scalar_select 0, %s5, %s3
  $region1: #{tpu_custom_call.1} parent=0
    #allocation3 [shape = 'u8[32768]{0}', space=vmem, size = 0x8000, scoped, tag = 'input window, operand 1, single buffered']
    #allocation4 [shape = 's32[1]{0}', space=sflag, size = 0x4, scoped, tag = 'scoped memory for tpu_custom_call.1']
    #allocation5 [shape = 's32[1]{0}', space=sflag, size = 0x4, scoped, tag = 'scoped memory for tpu_custom_call.1']
    #allocation6 [shape = 'u8[8192]{0}', space=vmem, size = 0x2000, scoped, tag = 'output window, operand 0, single buffered']
    %7 = vsyncpa [#allocation4], 0
    %8 = vsyncpa [#allocation5], 0
    // Predicated region
    $region2: #{tpu_custom_call.1} parent=1 // pred_check
      _
    $region3: #{tpu_custom_call.1} parent=1 // pred_check_branch
      %10 = sbr.rel (0) target = $region5
    $region4: #{tpu_custom_call.1} parent=1 // pred_region
      _
    $region5: #{tpu_custom_call.1} parent=1 // pred_fallthru
      _
    // Predicated region
    $region6: #{tpu_custom_call.1} parent=1 // pred_check
      _
    $region7: #{tpu_custom_call.1} parent=1 // pred_check_branch
      %12 = sbr.rel (0) target = $region9
    $region8: #{tpu_custom_call.1} parent=1 // pred_region
      %s14 = ssub.s32 1024, 1024
      %15 = vsyncadd [#allocation4], %s14
      %s16 = sshll.u32 [#allocation3], 4
      %s17 = int_to_ptr.vmem [resolvable:$true] %s16
      %22 = dma.hbm_to_vmem [thread:$0]  %s1, 1024, %s17, [#allocation4], 128, 128, 8
    $region9: #{tpu_custom_call.1} parent=1 // pred_fallthru
      _
    // Predicated region
    $region10: #{tpu_custom_call.1} parent=1 // pred_check
      _
    $region11: #{tpu_custom_call.1} parent=1 // pred_check_branch
      %24 = sbr.rel (0) target = $region13
    $region12: #{tpu_custom_call.1} parent=1 // pred_region
      %25 = dma.done [#allocation4], 1024
    $region13: #{tpu_custom_call.1} parent=1 // pred_fallthru
      _
    %v26 = vld [vmem:[%s0] sm:$0xff]
    %v27 = vld [vmem:[%s0 + $0x8] sm:$0xff]
    %v28 = vlaneseq
    %v29 = vand.u32 %v28, 127
    %30 = vset.pattern.permute.xlu0 0
    %31 = vperm.xlu0 %30, %v26
    %v32 = vpop.permute.xlu0 %31
    %33 = vset.pattern.permute.xlu0 0
    %34 = vperm.xlu0 %33, %v27
    %v35 = vpop.permute.xlu0 %34
    %vm36 = vcmp.eq.s32.totalorder %v29, %v32
    %vm37 = vcmp.eq.s32.totalorder %v29, %v35
    %v38 = vsel %vm36, 1, 0
    %v39 = vsel %vm37, 1, 0
    %v40 = vcvt.s32.f32 %v38
    %v41 = vcvt.s32.f32 %v39
    %v42 = vld [vmem:[#allocation3] sm:$0xff]
    %v43 = vld [vmem:[#allocation3 + $0x8] sm:$0xff]
    %v44 = vld [vmem:[#allocation3 + $0x10] sm:$0xff]
    %v45 = vld [vmem:[#allocation3 + $0x18] sm:$0xff]
    %v46 = vld [vmem:[#allocation3 + $0x20] sm:$0xff]
    %v47 = vld [vmem:[#allocation3 + $0x28] sm:$0xff]
    %v48 = vld [vmem:[#allocation3 + $0x30] sm:$0xff]
    %v49 = vld [vmem:[#allocation3 + $0x38] sm:$0xff]
    %vm50 = vcmask 523264
    %v52 = vsel %vm50, %v40, 0
    %v55 = vsel %vm50, %v41, 0
    %57 = vmatprep.subr.mxu0 0.0
    %58 = vmatpush1.msra.mxu0 0.0
    %59 = vmatprep.subr.mxu0 0.0
    %60 = vmatpush1.msra.mxu0 0.0
    %61 = vmatprep.subr.mxu0 0.0
    %62 = vmatpush1.msra.mxu0 0.0
    %63 = vmatprep.subr.mxu0 0.0
    %64 = vmatpush1.msra.mxu0 0.0
    %65 = vmatprep.subr.mxu0 0.0
    %66 = vmatpush1.msra.mxu0 0.0
    %67 = vmatprep.subr.mxu0 0.0
    %68 = vmatpush1.msra.mxu0 0.0
    %69 = vmatprep.subr.mxu0 0.0
    %70 = vmatpush1.msra.mxu0 0.0
    %71 = vmatprep.subr.mxu0 0.0
    %72 = vmatpush1.msra.mxu0 0.0
    %73 = vmatprep.subr.mxu0 0.0
    %74 = vmatpush1.msra.mxu0 %v49
    %75 = vmatprep.subr.mxu0 0.0
    %76 = vmatpush1.msra.mxu0 %v48
    %77 = vmatprep.subr.mxu0 0.0
    %78 = vmatpush1.msra.mxu0 %v47
    %79 = vmatprep.subr.mxu0 0.0
    %80 = vmatpush1.msra.mxu0 %v46
    %81 = vmatprep.subr.mxu0 0.0
    %82 = vmatpush1.msra.mxu0 %v45
    %83 = vmatprep.subr.mxu0 0.0
    %84 = vmatpush1.msra.mxu0 %v44
    %85 = vmatprep.subr.mxu0 0.0
    %86 = vmatpush1.msra.mxu0 %v43
    %87 = vmatprep.subr.mxu0 0.0
    %88 = vmatpush1.msra.mxu0 %v42
    %89 = vmatprep.subr.mxu0 0.0
    %90 = vmatpush2.msra.mxu0 0.0
    %91 = vmatprep.subr.mxu0 0.0
    %92 = vmatpush2.msra.mxu0 0.0
    %93 = vmatprep.subr.mxu0 0.0
    %94 = vmatpush2.msra.mxu0 0.0
    %95 = vmatprep.subr.mxu0 0.0
    %96 = vmatpush2.msra.mxu0 0.0
    %97 = vmatprep.subr.mxu0 0.0
    %98 = vmatpush2.msra.mxu0 0.0
    %99 = vmatprep.subr.mxu0 0.0
    %100 = vmatpush2.msra.mxu0 0.0
    %101 = vmatprep.subr.mxu0 0.0
    %102 = vmatpush2.msra.mxu0 0.0
    %103 = vmatprep.subr.mxu0 0.0
    %104 = vmatpush2.msra.mxu0 0.0
    %105 = vmatprep.subr.mxu0 0.0
    %106 = vmatpush2.msra.mxu0 0.0
    %107 = vmatprep.subr.mxu0 0.0
    %108 = vmatpush2.msra.mxu0 0.0
    %109 = vmatprep.subr.mxu0 0.0
    %110 = vmatpush2.msra.mxu0 0.0
    %111 = vmatprep.subr.mxu0 0.0
    %112 = vmatpush2.msra.mxu0 0.0
    %113 = vmatprep.subr.mxu0 0.0
    %114 = vmatpush2.msra.mxu0 0.0
    %115 = vmatprep.subr.mxu0 0.0
    %116 = vmatpush2.msra.mxu0 0.0
    %117 = vmatprep.subr.mxu0 0.0
    %118 = vmatpush2.msra.mxu0 0.0
    %119 = vmatprep.subr.mxu0 0.0
    %120 = vmatpush2.msra.mxu0 0.0
    %121 = vmatprep.mubr.f32.mxu0 0.0
    %122 = vmatmul.mubr.f32.gmra.mxu0 %v52
    %v123 = vpop.f32.mrf.mxu0
    %v124 = vadd.f32 0.0, %v123
    %v125 = vpop.f32.mrf.mxu0
    %126 = vmatprep.mubr.f32.mxu0 0.0
    %127 = vmatmul.mubr.f32.gmra.mxu0 %v55
    %v128 = vpop.f32.mrf.mxu0
    %v129 = vadd.f32 0.0, %v128
    %v130 = vpop.f32.mrf.mxu0
    %131 = vdwg.mxu0
    %132 = vst [vmem:[#allocation6] sm:$0xff] %v124
    %133 = vst [vmem:[#allocation6 + $0x8] sm:$0xff] %v129
    // Predicated region
    $region14: #{tpu_custom_call.1} parent=1 // pred_check
      _
    $region15: #{tpu_custom_call.1} parent=1 // pred_check_branch
      %135 = sbr.rel (0) target = $region17
    $region16: #{tpu_custom_call.1} parent=1 // pred_region
      %s137 = ssub.s32 256, 256
      %138 = vsyncadd [#allocation5], %s137
      %s139 = sshll.u32 [#allocation6], 4
      %s140 = int_to_ptr.vmem [resolvable:$true] %s139
      %145 = dma.vmem_to_hbm [thread:$0]  %s140, 256, %s2, [#allocation5], 128, 128, 8
    $region17: #{tpu_custom_call.1} parent=1 // pred_fallthru
      _
    // Predicated region
    $region18: #{tpu_custom_call.1} parent=1 // pred_check
      _
    $region19: #{tpu_custom_call.1} parent=1 // pred_check_branch
      %147 = sbr.rel (0) target = $region21
    $region20: #{tpu_custom_call.1} parent=1 // pred_region
      %148 = dma.done [#allocation5], 256
    $region21: #{tpu_custom_call.1} parent=1 // pred_fallthru
      _
    %149 = vsyncpa [#allocation4], 1
    %150 = vsyncpa [#allocation5], 1

</llo_original>
